<compile_context>
chip_gen: v6e
topology: v6e:2x2x1
jax: 0.10.0
libtpu: 0.0.40
codegen_flags: <defaults>
</compile_context>

<pallas_src>
import jax
import jax.numpy as jnp
import numpy as np
from jax import lax
from jax.experimental import pallas as pl
from jax.experimental.pallas import tpu as pltpu

PAD_R = 8      # sublane padding (one vreg tall)
PAD_C = 128    # lane padding

INPUT_SIZE = 4
H1 = 9         # l1 / l2 width
H_RNN = 3      # rnn hidden size
OUT = 2        # l3 output size

H_OFF = 16     # lane offset where h lives in the packed input / output
ONE_LANE = 127 # lane carrying the constant 1.0 used for bias folding
N_STAGES = 4   # l1, l2, fused-rnn, l3


def _qnet_kernel(x_ref, w_ref, out_ref):
    """Fused forward.

    x_ref  : (8, 128)       row 0: x in lanes [0,4), h0 in lanes [16,19), 1.0 in lane 127
    w_ref  : (4, 128, 128)  bias-folded weight slabs (l1, l2, rnn-combined, l3)
    out_ref: (8, 128)       row 0: logits in lanes [0,2), h_new in lanes [16,19)
    """
    xin = x_ref[...]
    lane = lax.broadcasted_iota(jnp.int32, xin.shape, 1)
    h_lanes = (lane >= H_OFF) & (lane < H_OFF + H_RNN)
    one_lane = lane == ONE_LANE

    # l1 + relu (bias rides in weight row ONE_LANE; 1.0 lane propagates through
    # the matmul because w[ONE_LANE, ONE_LANE] == 1, and relu(1) == 1).
    a1 = jnp.maximum(jnp.dot(xin, w_ref[0], preferred_element_type=jnp.float32), 0.0)
    # l2 + relu
    a2 = jnp.maximum(jnp.dot(a1, w_ref[1], preferred_element_type=jnp.float32), 0.0)

    # Fused single-step RNN: combined = [a2 | h0 | 1] (a2 lanes [0,9) are produced
    # by l2, h0 is re-injected from the input's lanes [16,19), the 1.0 lane is
    # already carried by a2).  One matmul computes
    #   pre = a2 @ W_ih.T + h0 @ W_hh.T + (b_ih + b_hh)
    combined = a2 + jnp.where(h_lanes, xin, 0.0)
    pre = jnp.dot(combined, w_ref[2], preferred_element_type=jnp.float32)
    # tanh everywhere except the constant-1 lane (keeps the bias lane == 1 for l3).
    h_act = jnp.where(one_lane, pre, jnp.tanh(pre))

    # l3 (+ identity block in the slab that copies h_new into output lanes [16,19)).
    out_ref[...] = jnp.dot(h_act, w_ref[3], preferred_element_type=jnp.float32)


def init_params(key):
    ks = jax.random.split(key, 10)
    s = 0.1
    return {
        "w1": s * jax.random.normal(ks[0], (H1, INPUT_SIZE), jnp.float32),
        "b1": s * jax.random.normal(ks[1], (H1,), jnp.float32),
        "w2": s * jax.random.normal(ks[2], (H1, H1), jnp.float32),
        "b2": s * jax.random.normal(ks[3], (H1,), jnp.float32),
        "w_ih": s * jax.random.normal(ks[4], (H_RNN, H1), jnp.float32),
        "b_ih": s * jax.random.normal(ks[5], (H_RNN,), jnp.float32),
        "w_hh": s * jax.random.normal(ks[6], (H_RNN, H_RNN), jnp.float32),
        "b_hh": s * jax.random.normal(ks[7], (H_RNN,), jnp.float32),
        "w3": s * jax.random.normal(ks[8], (OUT, H_RNN), jnp.float32),
        "b3": s * jax.random.normal(ks[9], (OUT,), jnp.float32),
    }


def pack_params(params):
    """Build the bias-folded, pre-transposed (4, 128, 128) weight slab ONCE."""
    p = {k: np.asarray(v, np.float32) for k, v in params.items()}
    w = np.zeros((N_STAGES, PAD_C, PAD_C), np.float32)
    # stage 0: l1
    w[0, :INPUT_SIZE, :H1] = p["w1"].T
    w[0, ONE_LANE, :H1] = p["b1"]
    w[0, ONE_LANE, ONE_LANE] = 1.0
    # stage 1: l2
    w[1, :H1, :H1] = p["w2"].T
    w[1, ONE_LANE, :H1] = p["b2"]
    w[1, ONE_LANE, ONE_LANE] = 1.0
    # stage 2: fused RNN step  (rows [0,9) = W_ih.T, rows [16,19) = W_hh.T)
    w[2, :H1, :H_RNN] = p["w_ih"].T
    w[2, H_OFF:H_OFF + H_RNN, :H_RNN] = p["w_hh"].T
    w[2, ONE_LANE, :H_RNN] = p["b_ih"] + p["b_hh"]
    w[2, ONE_LANE, ONE_LANE] = 1.0
    # stage 3: l3, plus identity block that routes h_new into output lanes [16,19)
    w[3, :H_RNN, :OUT] = p["w3"].T
    w[3, ONE_LANE, :OUT] = p["b3"]
    w[3, :H_RNN, H_OFF:H_OFF + H_RNN] = np.eye(H_RNN, dtype=np.float32)
    return jnp.asarray(w)


@jax.jit
def _forward_impl(x_row, h_row, w_packed):
    # Pack x, h0 and the constant 1.0 into a single (8,128) slab (row 0 only;
    # padding rows have no 1.0 lane so they remain exactly zero end-to-end).
    xin = jnp.zeros((PAD_R, PAD_C), jnp.float32)
    xin = xin.at[0, :INPUT_SIZE].set(x_row)
    xin = xin.at[0, H_OFF:H_OFF + H_RNN].set(h_row)
    xin = xin.at[0, ONE_LANE].set(1.0)

    vmem = pl.BlockSpec(memory_space=pltpu.MemorySpace.VMEM)
    out = pl.pallas_call(
        _qnet_kernel,
        out_shape=jax.ShapeDtypeStruct((PAD_R, PAD_C), jnp.float32),
        in_specs=[vmem, vmem],
        out_specs=vmem,
    )(xin, w_packed)

    logits = out[0, :OUT].reshape(1, 1, OUT)            # matches torch (1, 1, 2)
    h_new = out[0, H_OFF:H_OFF + H_RNN].reshape(1, 1, H_RNN)  # matches torch (1, 1, 3)
    return logits, h_new


def qnet_forward(x, w_packed, h=None):
    """x: (1, input_size).  h: None or (1, 1, H_RNN).  Returns (out, h_new)."""
    x_row = jnp.asarray(x, jnp.float32).reshape(INPUT_SIZE)
    if h is None:
        h_row = jnp.zeros((H_RNN,), jnp.float32)
    else:
        h_row = jnp.asarray(h, jnp.float32).reshape(H_RNN)
    return _forward_impl(x_row, h_row, w_packed)


def _reference(x, params, h=None):
    x = np.asarray(x, np.float32).reshape(1, INPUT_SIZE)
    h0 = np.zeros((1, H_RNN), np.float32) if h is None else np.asarray(h, np.float32).reshape(1, H_RNN)
    p = {k: np.asarray(v, np.float32) for k, v in params.items()}
    a1 = np.maximum(x @ p["w1"].T + p["b1"], 0.0)
    a2 = np.maximum(a1 @ p["w2"].T + p["b2"], 0.0)
    hn = np.tanh(a2 @ p["w_ih"].T + p["b_ih"] + h0 @ p["w_hh"].T + p["b_hh"])
    out = hn @ p["w3"].T + p["b3"]
    return out.reshape(1, 1, OUT), hn.reshape(1, 1, H_RNN)


if __name__ == "__main__":
    key = jax.random.PRNGKey(0)
    pkey, xkey1, xkey2 = jax.random.split(key, 3)
    params = init_params(pkey)
    w_packed = pack_params(params)   # packed ONCE, reused for every step

    # step 1: h = None (zero hidden state)
    x1 = jax.random.normal(xkey1, (1, INPUT_SIZE), jnp.float32)
    out1, h1 = qnet_forward(x1, w_packed, h=None)
    out1 = jax.block_until_ready(out1)
    h1 = jax.block_until_ready(h1)
    ref_out1, ref_h1 = _reference(x1, params, h=None)
    assert out1.shape == (1, 1, OUT) and h1.shape == (1, 1, H_RNN)
    np.testing.assert_allclose(np.asarray(out1), ref_out1, rtol=1e-5, atol=1e-5)
    np.testing.assert_allclose(np.asarray(h1), ref_h1, rtol=1e-5, atol=1e-5)

    # step 2: feed the hidden state back (exercises the W_hh path)
    x2 = jax.random.normal(xkey2, (1, INPUT_SIZE), jnp.float32)
    out2, h2 = qnet_forward(x2, w_packed, h=h1)
    out2 = jax.block_until_ready(out2)
    h2 = jax.block_until_ready(h2)
    ref_out2, ref_h2 = _reference(x2, params, h=ref_h1)
    np.testing.assert_allclose(np.asarray(out2), ref_out2, rtol=1e-5, atol=1e-5)
    np.testing.assert_allclose(np.asarray(h2), ref_h2, rtol=1e-5, atol=1e-5)

    print("KERNEL_OK")
</pallas_src>

<mosaic_0001>
module attributes {stable_mosaic.version = 11 : i64} {
  func.func @_qnet_kernel(%arg0: memref<8x128xf32, #tpu.memory_space<vmem>>, %arg1: memref<4x128x128xf32, #tpu.memory_space<vmem>>, %arg2: memref<8x128xf32, #tpu.memory_space<vmem>>) attributes {dimension_semantics = [], scalar_prefetch = 0 : i64, scratch_operands = 0 : i64, tpu.core_type = #tpu.core_type<tc>} {
    %c0 = arith.constant 0 : index
    %c0_0 = arith.constant 0 : index
    %0 = vector.load %arg0[%c0, %c0_0] : memref<8x128xf32, #tpu.memory_space<vmem>>, vector<8x128xf32>
    %1 = tpu.iota {dimensions = array<i32: 1>} : vector<8x128xi32>
    %c16_i32 = arith.constant 16 : i32
    %2 = vector.broadcast %c16_i32 : i32 to vector<8x128xi32>
    %3 = arith.cmpi sge, %1, %2 : vector<8x128xi32>
    %c19_i32 = arith.constant 19 : i32
    %4 = vector.broadcast %c19_i32 : i32 to vector<8x128xi32>
    %5 = arith.cmpi slt, %1, %4 : vector<8x128xi32>
    %6 = arith.andi %3, %5 : vector<8x128xi1>
    %c127_i32 = arith.constant 127 : i32
    %7 = vector.broadcast %c127_i32 : i32 to vector<8x128xi32>
    %8 = arith.cmpi eq, %1, %7 : vector<8x128xi32>
    %c0_1 = arith.constant 0 : index
    %c0_2 = arith.constant 0 : index
    %c0_3 = arith.constant 0 : index
    %9 = vector.load %arg1[%c0_1, %c0_2, %c0_3] : memref<4x128x128xf32, #tpu.memory_space<vmem>>, vector<1x128x128xf32>
    %10 = vector.shape_cast %9 : vector<1x128x128xf32> to vector<128x128xf32>
    %cst = arith.constant dense<0.000000e+00> : vector<8x128xf32>
    %11 = tpu.matmul %0, %10, %cst {dimension_numbers = #tpu.dot_dimension_numbers<[1], [0], [0], [1], [0, 0, 1, 1], [], []>} : vector<8x128xf32>, vector<128x128xf32>, vector<8x128xf32> -> vector<8x128xf32>
    %cst_4 = arith.constant 0.000000e+00 : f32
    %12 = vector.broadcast %cst_4 : f32 to vector<8x128xf32>
    %13 = arith.maximumf %11, %12 : vector<8x128xf32>
    %c1 = arith.constant 1 : index
    %c0_5 = arith.constant 0 : index
    %c0_6 = arith.constant 0 : index
    %14 = vector.load %arg1[%c1, %c0_5, %c0_6] : memref<4x128x128xf32, #tpu.memory_space<vmem>>, vector<1x128x128xf32>
    %15 = vector.shape_cast %14 : vector<1x128x128xf32> to vector<128x128xf32>
    %cst_7 = arith.constant dense<0.000000e+00> : vector<8x128xf32>
    %16 = tpu.matmul %13, %15, %cst_7 {dimension_numbers = #tpu.dot_dimension_numbers<[1], [0], [0], [1], [0, 0, 1, 1], [], []>} : vector<8x128xf32>, vector<128x128xf32>, vector<8x128xf32> -> vector<8x128xf32>
    %cst_8 = arith.constant 0.000000e+00 : f32
    %17 = vector.broadcast %cst_8 : f32 to vector<8x128xf32>
    %18 = arith.maximumf %16, %17 : vector<8x128xf32>
    %cst_9 = arith.constant 0.000000e+00 : f32
    %19 = vector.broadcast %cst_9 : f32 to vector<8x128xf32>
    %20 = arith.select %6, %0, %19 : vector<8x128xi1>, vector<8x128xf32>
    %21 = arith.addf %18, %20 : vector<8x128xf32>
    %c2 = arith.constant 2 : index
    %c0_10 = arith.constant 0 : index
    %c0_11 = arith.constant 0 : index
    %22 = vector.load %arg1[%c2, %c0_10, %c0_11] : memref<4x128x128xf32, #tpu.memory_space<vmem>>, vector<1x128x128xf32>
    %23 = vector.shape_cast %22 : vector<1x128x128xf32> to vector<128x128xf32>
    %cst_12 = arith.constant dense<0.000000e+00> : vector<8x128xf32>
    %24 = tpu.matmul %21, %23, %cst_12 {dimension_numbers = #tpu.dot_dimension_numbers<[1], [0], [0], [1], [0, 0, 1, 1], [], []>} : vector<8x128xf32>, vector<128x128xf32>, vector<8x128xf32> -> vector<8x128xf32>
    %25 = math.tanh %24 : vector<8x128xf32>
    %26 = arith.select %8, %24, %25 : vector<8x128xi1>, vector<8x128xf32>
    %c3 = arith.constant 3 : index
    %c0_13 = arith.constant 0 : index
    %c0_14 = arith.constant 0 : index
    %27 = vector.load %arg1[%c3, %c0_13, %c0_14] : memref<4x128x128xf32, #tpu.memory_space<vmem>>, vector<1x128x128xf32>
    %28 = vector.shape_cast %27 : vector<1x128x128xf32> to vector<128x128xf32>
    %cst_15 = arith.constant dense<0.000000e+00> : vector<8x128xf32>
    %29 = tpu.matmul %26, %28, %cst_15 {dimension_numbers = #tpu.dot_dimension_numbers<[1], [0], [0], [1], [0, 0, 1, 1], [], []>} : vector<8x128xf32>, vector<128x128xf32>, vector<8x128xf32> -> vector<8x128xf32>
    %c0_16 = arith.constant 0 : index
    %c0_17 = arith.constant 0 : index
    %30 = vector.load %arg2[%c0_16, %c0_17] : memref<8x128xf32, #tpu.memory_space<vmem>>, vector<8x128xf32>
    tpu.vector_store %arg2[%c0_16, %c0_17], %29 {strides = array<i32>} : memref<8x128xf32, #tpu.memory_space<vmem>>, vector<8x128xf32>,
    return
  }
}

</mosaic_0001>

<llo_original>
// kernel: _forward_impl.1
$region0: #{_forward_impl.1}
  #allocation0 [shape = 'u32[]', space=smem, size = 0x4, offset = 0x4, fixed_abs, tag = 'smem constant byte address 0x4 - core index']
  #allocation1 [shape = 'u32[144,128]{1,0:T(1,128)}', space=vmem, size = 0x12000, scoped, tag = 'internal scratch']
  %s0 = inlined_call_operand.vmem [shape: f32[8,128], index: 0, kind: input, shape index: {}]
  %s1 = inlined_call_operand.hbm [shape: f32[4,128,128], index: 1, kind: input, shape index: {}]
  %s2 = inlined_call_operand.vmem [shape: f32[8,128], index: 2, kind: output, shape index: {}]
  %s3 = sld [smem:[#allocation0]]
  $region22: #{_forward_impl.1} parent=0
    _
  %s5 = ssub.s32 1, %s3
  %s6 = scalar_select 0, %s5, %s3
  $region1: #{_forward_impl.1} parent=0
    #allocation2 [shape = 'u8[262144]{0}', space=vmem, size = 0x40000, scoped, tag = 'input window, operand 1, single buffered']
    #allocation3 [shape = 's32[1]{0}', space=sflag, size = 0x4, scoped, tag = 'scoped memory for _forward_impl.1']
    %7 = vsyncpa [#allocation3], 0
    // Predicated region
    $region2: #{_forward_impl.1} parent=1 // pred_check
      _
    $region3: #{_forward_impl.1} parent=1 // pred_check_branch
      %9 = sbr.rel (0) target = $region5
    $region4: #{_forward_impl.1} parent=1 // pred_region
      _
    $region5: #{_forward_impl.1} parent=1 // pred_fallthru
      _
    // Predicated region
    $region6: #{_forward_impl.1} parent=1 // pred_check
      _
    $region7: #{_forward_impl.1} parent=1 // pred_check_branch
      %11 = sbr.rel (0) target = $region9
    $region8: #{_forward_impl.1} parent=1 // pred_region
      %s13 = ssub.s32 8192, 8192
      %14 = vsyncadd [#allocation3], %s13
      %s15 = sshll.u32 [#allocation2], 4
      %s16 = int_to_ptr.vmem [resolvable:$true] %s15
      %21 = dma.hbm_to_vmem [thread:$0]  %s1, 8192, %s16, [#allocation3], 128, 128, 8
    $region9: #{_forward_impl.1} parent=1 // pred_fallthru
      _
    // Predicated region
    $region10: #{_forward_impl.1} parent=1 // pred_check
      _
    $region11: #{_forward_impl.1} parent=1 // pred_check_branch
      %23 = sbr.rel (0) target = $region13
    $region12: #{_forward_impl.1} parent=1 // pred_region
      %24 = dma.done [#allocation3], 8192
    $region13: #{_forward_impl.1} parent=1 // pred_fallthru
      _
    %v25 = vld [vmem:[%s0] sm:$0xff]
    %v26 = vlaneseq
    %v27 = vand.u32 %v26, 127
    %vm28 = vcmp.ge.s32.totalorder %v27, 16
    %vm29 = vcmp.lt.s32.totalorder %v27, 19
    %vm30 = vmand %vm28, %vm29
    %vm31 = vcmp.eq.s32.totalorder %v27, 127
    %v32 = vld [vmem:[#allocation2] sm:$0xff]
    %v33 = vld [vmem:[#allocation2 + $0x8] sm:$0xff]
    %v34 = vld [vmem:[#allocation2 + $0x10] sm:$0xff]
    %v35 = vld [vmem:[#allocation2 + $0x18] sm:$0xff]
    %v36 = vld [vmem:[#allocation2 + $0x20] sm:$0xff]
    %v37 = vld [vmem:[#allocation2 + $0x28] sm:$0xff]
    %v38 = vld [vmem:[#allocation2 + $0x30] sm:$0xff]
    %v39 = vld [vmem:[#allocation2 + $0x38] sm:$0xff]
    %v40 = vld [vmem:[#allocation2 + $0x40] sm:$0xff]
    %v41 = vld [vmem:[#allocation2 + $0x48] sm:$0xff]
    %v42 = vld [vmem:[#allocation2 + $0x50] sm:$0xff]
    %v43 = vld [vmem:[#allocation2 + $0x58] sm:$0xff]
    %v44 = vld [vmem:[#allocation2 + $0x60] sm:$0xff]
    %v45 = vld [vmem:[#allocation2 + $0x68] sm:$0xff]
    %v46 = vld [vmem:[#allocation2 + $0x70] sm:$0xff]
    %v47 = vld [vmem:[#allocation2 + $0x78] sm:$0xff]
    %48 = vmatprep.subr.mxu0 0.0
    %49 = vmatpush1.msra.mxu0 %v47
    %50 = vmatprep.subr.mxu0 0.0
    %51 = vmatpush1.msra.mxu0 %v46
    %52 = vmatprep.subr.mxu0 0.0
    %53 = vmatpush1.msra.mxu0 %v45
    %54 = vmatprep.subr.mxu0 0.0
    %55 = vmatpush1.msra.mxu0 %v44
    %56 = vmatprep.subr.mxu0 0.0
    %57 = vmatpush1.msra.mxu0 %v43
    %58 = vmatprep.subr.mxu0 0.0
    %59 = vmatpush1.msra.mxu0 %v42
    %60 = vmatprep.subr.mxu0 0.0
    %61 = vmatpush1.msra.mxu0 %v41
    %62 = vmatprep.subr.mxu0 0.0
    %63 = vmatpush1.msra.mxu0 %v40
    %64 = vmatprep.subr.mxu0 0.0
    %65 = vmatpush1.msra.mxu0 %v39
    %66 = vmatprep.subr.mxu0 0.0
    %67 = vmatpush1.msra.mxu0 %v38
    %68 = vmatprep.subr.mxu0 0.0
    %69 = vmatpush1.msra.mxu0 %v37
    %70 = vmatprep.subr.mxu0 0.0
    %71 = vmatpush1.msra.mxu0 %v36
    %72 = vmatprep.subr.mxu0 0.0
    %73 = vmatpush1.msra.mxu0 %v35
    %74 = vmatprep.subr.mxu0 0.0
    %75 = vmatpush1.msra.mxu0 %v34
    %76 = vmatprep.subr.mxu0 0.0
    %77 = vmatpush1.msra.mxu0 %v33
    %78 = vmatprep.subr.mxu0 0.0
    %79 = vmatpush1.msra.mxu0 %v32
    %80 = vmatprep.subr.mxu0 0.0
    %81 = vmatpush2.msra.mxu0 0.0
    %82 = vmatprep.subr.mxu0 0.0
    %83 = vmatpush2.msra.mxu0 0.0
    %84 = vmatprep.subr.mxu0 0.0
    %85 = vmatpush2.msra.mxu0 0.0
    %86 = vmatprep.subr.mxu0 0.0
    %87 = vmatpush2.msra.mxu0 0.0
    %88 = vmatprep.subr.mxu0 0.0
    %89 = vmatpush2.msra.mxu0 0.0
    %90 = vmatprep.subr.mxu0 0.0
    %91 = vmatpush2.msra.mxu0 0.0
    %92 = vmatprep.subr.mxu0 0.0
    %93 = vmatpush2.msra.mxu0 0.0
    %94 = vmatprep.subr.mxu0 0.0
    %95 = vmatpush2.msra.mxu0 0.0
    %96 = vmatprep.subr.mxu0 0.0
    %97 = vmatpush2.msra.mxu0 0.0
    %98 = vmatprep.subr.mxu0 0.0
    %99 = vmatpush2.msra.mxu0 0.0
    %100 = vmatprep.subr.mxu0 0.0
    %101 = vmatpush2.msra.mxu0 0.0
    %102 = vmatprep.subr.mxu0 0.0
    %103 = vmatpush2.msra.mxu0 0.0
    %104 = vmatprep.subr.mxu0 0.0
    %105 = vmatpush2.msra.mxu0 0.0
    %106 = vmatprep.subr.mxu0 0.0
    %107 = vmatpush2.msra.mxu0 0.0
    %108 = vmatprep.subr.mxu0 0.0
    %109 = vmatpush2.msra.mxu0 0.0
    %110 = vmatprep.subr.mxu0 0.0
    %111 = vmatpush2.msra.mxu0 0.0
    %112 = vmatprep.mubr.f32.mxu0 0.0
    %113 = vmatmul.mubr.f32.gmra.mxu0 %v25
    %v114 = vpop.f32.mrf.mxu0
    %v115 = vadd.f32 0.0, %v114
    %v116 = vpop.f32.mrf.mxu0
    %117 = vdwg.mxu0
    %v118 = vmax.f32 %v115, 0.0
    %s119 = scalar_lea.vmem [#allocation2], 128
    %v120 = vld [vmem:[%s119] sm:$0xff]
    %v121 = vld [vmem:[%s119 + $0x8] sm:$0xff]
    %v122 = vld [vmem:[%s119 + $0x10] sm:$0xff]
    %v123 = vld [vmem:[%s119 + $0x18] sm:$0xff]
    %v124 = vld [vmem:[%s119 + $0x20] sm:$0xff]
    %v125 = vld [vmem:[%s119 + $0x28] sm:$0xff]
    %v126 = vld [vmem:[%s119 + $0x30] sm:$0xff]
    %v127 = vld [vmem:[%s119 + $0x38] sm:$0xff]
    %v128 = vld [vmem:[%s119 + $0x40] sm:$0xff]
    %v129 = vld [vmem:[%s119 + $0x48] sm:$0xff]
    %v130 = vld [vmem:[%s119 + $0x50] sm:$0xff]
    %v131 = vld [vmem:[%s119 + $0x58] sm:$0xff]
    %v132 = vld [vmem:[%s119 + $0x60] sm:$0xff]
    %v133 = vld [vmem:[%s119 + $0x68] sm:$0xff]
    %v134 = vld [vmem:[%s119 + $0x70] sm:$0xff]
    %v135 = vld [vmem:[%s119 + $0x78] sm:$0xff]
    %136 = vmatprep.subr.mxu0 0.0
    %137 = vmatpush1.msra.mxu0 %v135
    %138 = vmatprep.subr.mxu0 0.0
    %139 = vmatpush1.msra.mxu0 %v134
    %140 = vmatprep.subr.mxu0 0.0
    %141 = vmatpush1.msra.mxu0 %v133
    %142 = vmatprep.subr.mxu0 0.0
    %143 = vmatpush1.msra.mxu0 %v132
    %144 = vmatprep.subr.mxu0 0.0
    %145 = vmatpush1.msra.mxu0 %v131
    %146 = vmatprep.subr.mxu0 0.0
    %147 = vmatpush1.msra.mxu0 %v130
    %148 = vmatprep.subr.mxu0 0.0
    %149 = vmatpush1.msra.mxu0 %v129
    %150 = vmatprep.subr.mxu0 0.0
    %151 = vmatpush1.msra.mxu0 %v128
    %152 = vmatprep.subr.mxu0 0.0
    %153 = vmatpush1.msra.mxu0 %v127
    %154 = vmatprep.subr.mxu0 0.0
    %155 = vmatpush1.msra.mxu0 %v126
    %156 = vmatprep.subr.mxu0 0.0
    %157 = vmatpush1.msra.mxu0 %v125
    %158 = vmatprep.subr.mxu0 0.0
    %159 = vmatpush1.msra.mxu0 %v124
    %160 = vmatprep.subr.mxu0 0.0
    %161 = vmatpush1.msra.mxu0 %v123
    %162 = vmatprep.subr.mxu0 0.0
    %163 = vmatpush1.msra.mxu0 %v122
    %164 = vmatprep.subr.mxu0 0.0
    %165 = vmatpush1.msra.mxu0 %v121
    %166 = vmatprep.subr.mxu0 0.0
    %167 = vmatpush1.msra.mxu0 %v120
    %168 = vmatprep.subr.mxu0 0.0
    %169 = vmatpush2.msra.mxu0 0.0
    %170 = vmatprep.subr.mxu0 0.0
    %171 = vmatpush2.msra.mxu0 0.0
    %172 = vmatprep.subr.mxu0 0.0
    %173 = vmatpush2.msra.mxu0 0.0
    %174 = vmatprep.subr.mxu0 0.0
    %175 = vmatpush2.msra.mxu0 0.0
    %176 = vmatprep.subr.mxu0 0.0
    %177 = vmatpush2.msra.mxu0 0.0
    %178 = vmatprep.subr.mxu0 0.0
    %179 = vmatpush2.msra.mxu0 0.0
    %180 = vmatprep.subr.mxu0 0.0
    %181 = vmatpush2.msra.mxu0 0.0
    %182 = vmatprep.subr.mxu0 0.0
    %183 = vmatpush2.msra.mxu0 0.0
    %184 = vmatprep.subr.mxu0 0.0
    %185 = vmatpush2.msra.mxu0 0.0
    %186 = vmatprep.subr.mxu0 0.0
    %187 = vmatpush2.msra.mxu0 0.0
    %188 = vmatprep.subr.mxu0 0.0
    %189 = vmatpush2.msra.mxu0 0.0
    %190 = vmatprep.subr.mxu0 0.0
    %191 = vmatpush2.msra.mxu0 0.0
    %192 = vmatprep.subr.mxu0 0.0
    %193 = vmatpush2.msra.mxu0 0.0
    %194 = vmatprep.subr.mxu0 0.0
    %195 = vmatpush2.msra.mxu0 0.0
    %196 = vmatprep.subr.mxu0 0.0
    %197 = vmatpush2.msra.mxu0 0.0
    %198 = vmatprep.subr.mxu0 0.0
    %199 = vmatpush2.msra.mxu0 0.0
    %200 = vmatprep.mubr.f32.mxu0 0.0
    %201 = vmatmul.mubr.f32.gmra.mxu0 %v118
    %v202 = vpop.f32.mrf.mxu0
    %v203 = vadd.f32 0.0, %v202
    %v204 = vpop.f32.mrf.mxu0
    %205 = vdwg.mxu0
    %v206 = vmax.f32 %v203, 0.0
    %v207 = vsel %vm30, %v25, 0.0
    %v208 = vadd.f32 %v206, %v207
    %s209 = scalar_lea.vmem [#allocation2], 256
    %v210 = vld [vmem:[%s209] sm:$0xff]
    %v211 = vld [vmem:[%s209 + $0x8] sm:$0xff]
    %v212 = vld [vmem:[%s209 + $0x10] sm:$0xff]
    %v213 = vld [vmem:[%s209 + $0x18] sm:$0xff]
    %v214 = vld [vmem:[%s209 + $0x20] sm:$0xff]
    %v215 = vld [vmem:[%s209 + $0x28] sm:$0xff]
    %v216 = vld [vmem:[%s209 + $0x30] sm:$0xff]
    %v217 = vld [vmem:[%s209 + $0x38] sm:$0xff]
    %v218 = vld [vmem:[%s209 + $0x40] sm:$0xff]
    %v219 = vld [vmem:[%s209 + $0x48] sm:$0xff]
    %v220 = vld [vmem:[%s209 + $0x50] sm:$0xff]
    %v221 = vld [vmem:[%s209 + $0x58] sm:$0xff]
    %v222 = vld [vmem:[%s209 + $0x60] sm:$0xff]
    %v223 = vld [vmem:[%s209 + $0x68] sm:$0xff]
    %v224 = vld [vmem:[%s209 + $0x70] sm:$0xff]
    %v225 = vld [vmem:[%s209 + $0x78] sm:$0xff]
    %226 = vmatprep.subr.mxu0 0.0
    %227 = vmatpush1.msra.mxu0 %v225
    %228 = vmatprep.subr.mxu0 0.0
    %229 = vmatpush1.msra.mxu0 %v224
    %230 = vmatprep.subr.mxu0 0.0
    %231 = vmatpush1.msra.mxu0 %v223
    %232 = vmatprep.subr.mxu0 0.0
    %233 = vmatpush1.msra.mxu0 %v222
    %234 = vmatprep.subr.mxu0 0.0
    %235 = vmatpush1.msra.mxu0 %v221
    %236 = vmatprep.subr.mxu0 0.0
    %237 = vmatpush1.msra.mxu0 %v220
    %238 = vmatprep.subr.mxu0 0.0
    %239 = vmatpush1.msra.mxu0 %v219
    %240 = vmatprep.subr.mxu0 0.0
    %241 = vmatpush1.msra.mxu0 %v218
    %242 = vmatprep.subr.mxu0 0.0
    %243 = vmatpush1.msra.mxu0 %v217
    %244 = vmatprep.subr.mxu0 0.0
    %245 = vmatpush1.msra.mxu0 %v216
    %246 = vmatprep.subr.mxu0 0.0
    %247 = vmatpush1.msra.mxu0 %v215
    %248 = vmatprep.subr.mxu0 0.0
    %249 = vmatpush1.msra.mxu0 %v214
    %250 = vmatprep.subr.mxu0 0.0
    %251 = vmatpush1.msra.mxu0 %v213
    %252 = vmatprep.subr.mxu0 0.0
    %253 = vmatpush1.msra.mxu0 %v212
    %254 = vmatprep.subr.mxu0 0.0
    %255 = vmatpush1.msra.mxu0 %v211
    %256 = vmatprep.subr.mxu0 0.0
    %257 = vmatpush1.msra.mxu0 %v210
    %258 = vmatprep.subr.mxu0 0.0
    %259 = vmatpush2.msra.mxu0 0.0
    %260 = vmatprep.subr.mxu0 0.0
    %261 = vmatpush2.msra.mxu0 0.0
    %262 = vmatprep.subr.mxu0 0.0
    %263 = vmatpush2.msra.mxu0 0.0
    %264 = vmatprep.subr.mxu0 0.0
    %265 = vmatpush2.msra.mxu0 0.0
    %266 = vmatprep.subr.mxu0 0.0
    %267 = vmatpush2.msra.mxu0 0.0
    %268 = vmatprep.subr.mxu0 0.0
    %269 = vmatpush2.msra.mxu0 0.0
    %270 = vmatprep.subr.mxu0 0.0
    %271 = vmatpush2.msra.mxu0 0.0
    %272 = vmatprep.subr.mxu0 0.0
    %273 = vmatpush2.msra.mxu0 0.0
    %274 = vmatprep.subr.mxu0 0.0
    %275 = vmatpush2.msra.mxu0 0.0
    %276 = vmatprep.subr.mxu0 0.0
    %277 = vmatpush2.msra.mxu0 0.0
    %278 = vmatprep.subr.mxu0 0.0
    %279 = vmatpush2.msra.mxu0 0.0
    %280 = vmatprep.subr.mxu0 0.0
    %281 = vmatpush2.msra.mxu0 0.0
    %282 = vmatprep.subr.mxu0 0.0
    %283 = vmatpush2.msra.mxu0 0.0
    %284 = vmatprep.subr.mxu0 0.0
    %285 = vmatpush2.msra.mxu0 0.0
    %286 = vmatprep.subr.mxu0 0.0
    %287 = vmatpush2.msra.mxu0 0.0
    %288 = vmatprep.subr.mxu0 0.0
    %289 = vmatpush2.msra.mxu0 0.0
    %290 = vmatprep.mubr.f32.mxu0 0.0
    %291 = vmatmul.mubr.f32.gmra.mxu0 %v208
    %v292 = vpop.f32.mrf.mxu0
    %v293 = vadd.f32 0.0, %v292
    %v294 = vpop.f32.mrf.mxu0
    %295 = vdwg.mxu0
    %v296 = vtanh.pop %v293
    %v297 = vsel %vm31, %v293, %v296
    %s298 = scalar_lea.vmem [#allocation2], 384
    %v299 = vld [vmem:[%s298] sm:$0xff]
    %v300 = vld [vmem:[%s298 + $0x8] sm:$0xff]
    %v301 = vld [vmem:[%s298 + $0x10] sm:$0xff]
    %v302 = vld [vmem:[%s298 + $0x18] sm:$0xff]
    %v303 = vld [vmem:[%s298 + $0x20] sm:$0xff]
    %v304 = vld [vmem:[%s298 + $0x28] sm:$0xff]
    %v305 = vld [vmem:[%s298 + $0x30] sm:$0xff]
    %v306 = vld [vmem:[%s298 + $0x38] sm:$0xff]
    %v307 = vld [vmem:[%s298 + $0x40] sm:$0xff]
    %v308 = vld [vmem:[%s298 + $0x48] sm:$0xff]
    %v309 = vld [vmem:[%s298 + $0x50] sm:$0xff]
    %v310 = vld [vmem:[%s298 + $0x58] sm:$0xff]
    %v311 = vld [vmem:[%s298 + $0x60] sm:$0xff]
    %v312 = vld [vmem:[%s298 + $0x68] sm:$0xff]
    %v313 = vld [vmem:[%s298 + $0x70] sm:$0xff]
    %v314 = vld [vmem:[%s298 + $0x78] sm:$0xff]
    %315 = vmatprep.subr.mxu0 0.0
    %316 = vmatpush1.msra.mxu0 %v314
    %317 = vmatprep.subr.mxu0 0.0
    %318 = vmatpush1.msra.mxu0 %v313
    %319 = vmatprep.subr.mxu0 0.0
    %320 = vmatpush1.msra.mxu0 %v312
    %321 = vmatprep.subr.mxu0 0.0
    %322 = vmatpush1.msra.mxu0 %v311
    %323 = vmatprep.subr.mxu0 0.0
    %324 = vmatpush1.msra.mxu0 %v310
    %325 = vmatprep.subr.mxu0 0.0
    %326 = vmatpush1.msra.mxu0 %v309
    %327 = vmatprep.subr.mxu0 0.0
    %328 = vmatpush1.msra.mxu0 %v308
    %329 = vmatprep.subr.mxu0 0.0
    %330 = vmatpush1.msra.mxu0 %v307
    %331 = vmatprep.subr.mxu0 0.0
    %332 = vmatpush1.msra.mxu0 %v306
    %333 = vmatprep.subr.mxu0 0.0
    %334 = vmatpush1.msra.mxu0 %v305
    %335 = vmatprep.subr.mxu0 0.0
    %336 = vmatpush1.msra.mxu0 %v304
    %337 = vmatprep.subr.mxu0 0.0
    %338 = vmatpush1.msra.mxu0 %v303
    %339 = vmatprep.subr.mxu0 0.0
    %340 = vmatpush1.msra.mxu0 %v302
    %341 = vmatprep.subr.mxu0 0.0
    %342 = vmatpush1.msra.mxu0 %v301
    %343 = vmatprep.subr.mxu0 0.0
    %344 = vmatpush1.msra.mxu0 %v300
    %345 = vmatprep.subr.mxu0 0.0
    %346 = vmatpush1.msra.mxu0 %v299
    %347 = vmatprep.subr.mxu0 0.0
    %348 = vmatpush2.msra.mxu0 0.0
    %349 = vmatprep.subr.mxu0 0.0
    %350 = vmatpush2.msra.mxu0 0.0
    %351 = vmatprep.subr.mxu0 0.0
    %352 = vmatpush2.msra.mxu0 0.0
    %353 = vmatprep.subr.mxu0 0.0
    %354 = vmatpush2.msra.mxu0 0.0
    %355 = vmatprep.subr.mxu0 0.0
    %356 = vmatpush2.msra.mxu0 0.0
    %357 = vmatprep.subr.mxu0 0.0
    %358 = vmatpush2.msra.mxu0 0.0
    %359 = vmatprep.subr.mxu0 0.0
    %360 = vmatpush2.msra.mxu0 0.0
    %361 = vmatprep.subr.mxu0 0.0
    %362 = vmatpush2.msra.mxu0 0.0
    %363 = vmatprep.subr.mxu0 0.0
    %364 = vmatpush2.msra.mxu0 0.0
    %365 = vmatprep.subr.mxu0 0.0
    %366 = vmatpush2.msra.mxu0 0.0
    %367 = vmatprep.subr.mxu0 0.0
    %368 = vmatpush2.msra.mxu0 0.0
    %369 = vmatprep.subr.mxu0 0.0
    %370 = vmatpush2.msra.mxu0 0.0
    %371 = vmatprep.subr.mxu0 0.0
    %372 = vmatpush2.msra.mxu0 0.0
    %373 = vmatprep.subr.mxu0 0.0
    %374 = vmatpush2.msra.mxu0 0.0
    %375 = vmatprep.subr.mxu0 0.0
    %376 = vmatpush2.msra.mxu0 0.0
    %377 = vmatprep.subr.mxu0 0.0
    %378 = vmatpush2.msra.mxu0 0.0
    %379 = vmatprep.mubr.f32.mxu0 0.0
    %380 = vmatmul.mubr.f32.gmra.mxu0 %v297
    %v381 = vpop.f32.mrf.mxu0
    %v382 = vadd.f32 0.0, %v381
    %v383 = vpop.f32.mrf.mxu0
    %384 = vdwg.mxu0
    %385 = vst [vmem:[%s2] sm:$0xff] %v382
    // Predicated region
    $region14: #{_forward_impl.1} parent=1 // pred_check
      _
    $region15: #{_forward_impl.1} parent=1 // pred_check_branch
      %387 = sbr.rel (0) target = $region17
    $region16: #{_forward_impl.1} parent=1 // pred_region
      _
    $region17: #{_forward_impl.1} parent=1 // pred_fallthru
      _
    // Predicated region
    $region18: #{_forward_impl.1} parent=1 // pred_check
      _
    $region19: #{_forward_impl.1} parent=1 // pred_check_branch
      %389 = sbr.rel (0) target = $region21
    $region20: #{_forward_impl.1} parent=1 // pred_region
      _
    $region21: #{_forward_impl.1} parent=1 // pred_fallthru
      _
    %390 = vsyncpa [#allocation3], 1

</llo_original>
